<compile_context>
chip_gen: v7x
topology: tpu7x:2x2x1
jax: 0.10.0
libtpu: 0.0.40
codegen_flags: <defaults>
</compile_context>

<pallas_src>
import functools

import jax
import jax.numpy as jnp
import numpy as np
from jax.experimental import pallas as pl
from jax.experimental.pallas import tpu as pltpu


# ----------------------------------------------------------------------------
# Kernels
# ----------------------------------------------------------------------------
def encoder_kernel(x_ref, adj_ref, w0_ref, wcat_ref, noise_ref, z_ref, *, h2):
    """Two GCN layers (mu/sigma fused) + reparameterization -> Z."""
    adj = adj_ref[...]

    # base_gcn: relu(adj @ (X @ W0))
    xw = jnp.dot(x_ref[...], w0_ref[...], preferred_element_type=jnp.float32)
    hidden = jnp.maximum(
        jnp.dot(adj, xw, preferred_element_type=jnp.float32), 0.0
    )

    # Fused gcn_mean / gcn_logstddev (identity activation):
    #   adj @ (hidden @ [W_mu | W_sig])
    hcat = jnp.dot(hidden, wcat_ref[...], preferred_element_type=jnp.float32)
    ms = jnp.dot(adj, hcat, preferred_element_type=jnp.float32)

    mean = ms[:, :h2]            # lane-aligned slices (h2 is a multiple of 128)
    logstd = ms[:, h2:]

    # Z = noise * exp(logstd) + mean
    z_ref[...] = noise_ref[...] * jnp.exp(logstd) + mean


def decoder_kernel(zi_ref, zj_ref, out_ref):
    """One (tm, tn) tile of sigmoid(Z @ Z.T), contracting without an explicit
    transpose of Z."""
    logits = jax.lax.dot_general(
        zi_ref[...], zj_ref[...],
        dimension_numbers=(((1,), (1,)), ((), ())),
        preferred_element_type=jnp.float32,
    )
    # TODO(synk): if the downstream loss is BCE-with-logits, emit raw logits
    # here instead of sigmoid to avoid the N^2 EUP-bound epilogue at scale.
    out_ref[...] = jax.nn.sigmoid(logits)


# ----------------------------------------------------------------------------
# Wrapper
# ----------------------------------------------------------------------------
def _round_up(x, m):
    return ((x + m - 1) // m) * m


def _pad2(a, rows, cols):
    return jnp.pad(a.astype(jnp.float32),
                   ((0, rows - a.shape[0]), (0, cols - a.shape[1])))


def vgae_forward(x, adj, w0, wmu, wsig, noise, *, tile=128):
    n, d = x.shape
    h1 = w0.shape[1]
    h2 = wmu.shape[1]

    # Lane-dense padded sizes (zero padding is inert for this computation:
    # padded rows/cols of adj, X, W*, noise are all zero, so Z is zero there
    # and the valid [N, N] block of A_pred is unchanged).
    n_p = _round_up(n, 128)
    d_p = _round_up(d, 128)
    h1_p = _round_up(h1, 128)
    h2_p = _round_up(h2, 128)

    x_p = _pad2(x, n_p, d_p)
    adj_p = _pad2(adj, n_p, n_p)
    w0_p = _pad2(w0, d_p, h1_p)
    wcat = jnp.concatenate(
        [_pad2(wmu, h1_p, h2_p), _pad2(wsig, h1_p, h2_p)], axis=1
    )                                    # [h1_p, 2*h2_p]
    noise_p = _pad2(noise, n_p, h2_p)

    vmem_cap = 64 * 1024 * 1024          # <= physical VMEM on v5e/v6e/v7x

    full = lambda a: pl.BlockSpec(a.shape, lambda: (0,) * a.ndim)

    # --- Encoder: single full-block kernel (weights + adj resident in VMEM).
    z = pl.pallas_call(
        functools.partial(encoder_kernel, h2=h2_p),
        out_shape=jax.ShapeDtypeStruct((n_p, h2_p), jnp.float32),
        in_specs=[full(x_p), full(adj_p), full(w0_p), full(wcat),
                  full(noise_p)],
        out_specs=pl.BlockSpec((n_p, h2_p), lambda: (0, 0)),
        compiler_params=pltpu.CompilerParams(vmem_limit_bytes=vmem_cap),
    )(x_p, adj_p, w0_p, wcat, noise_p)

    # --- Decoder: tiled (i, j) grid over A_pred; Z tiles stream, both grid
    #     axes independent -> parallel (uses both TCs on v7x).
    tm = tn = min(tile, n_p)
    a_pred_p = pl.pallas_call(
        decoder_kernel,
        out_shape=jax.ShapeDtypeStruct((n_p, n_p), jnp.float32),
        grid=(n_p // tm, n_p // tn),
        in_specs=[pl.BlockSpec((tm, h2_p), lambda i, j: (i, 0)),
                  pl.BlockSpec((tn, h2_p), lambda i, j: (j, 0))],
        out_specs=pl.BlockSpec((tm, tn), lambda i, j: (i, j)),
        compiler_params=pltpu.CompilerParams(
            dimension_semantics=("parallel", "parallel"),
            vmem_limit_bytes=vmem_cap,
        ),
    )(z, z)

    return a_pred_p[:n, :n]


def glorot_init(key, input_dim, output_dim):
    init_range = np.sqrt(6.0 / (input_dim + output_dim))
    u = jax.random.uniform(key, (input_dim, output_dim), dtype=jnp.float32)
    return u * 2.0 * init_range - init_range


# ----------------------------------------------------------------------------
# Demo / correctness check
# ----------------------------------------------------------------------------
if __name__ == "__main__":
    # Small shapes consistent with the module: N nodes, feature dims.
    N = 32            # number of graph nodes
    input_dim = 16    # args.input_dim
    hidden1 = 32      # args.hidden1_dim
    hidden2 = 16      # args.hidden2_dim

    key = jax.random.PRNGKey(0)
    k_x, k_adj, k_w0, k_wmu, k_wsig, k_noise = jax.random.split(key, 6)

    X = jax.random.normal(k_x, (N, input_dim), dtype=jnp.float32)
    # Symmetric "normalized adjacency"-like matrix, deterministic.
    A = jax.random.uniform(k_adj, (N, N), dtype=jnp.float32)
    adj = (A + A.T) / (2.0 * N)

    W0 = glorot_init(k_w0, input_dim, hidden1)
    Wmu = glorot_init(k_wmu, hidden1, hidden2)
    Wsig = glorot_init(k_wsig, hidden1, hidden2)

    # Deterministic stand-in for torch.randn gaussian noise in encode().
    noise = jax.random.normal(k_noise, (N, hidden2), dtype=jnp.float32)

    A_pred = vgae_forward(X, adj, W0, Wmu, Wsig, noise)
    A_pred = jax.block_until_ready(A_pred)

    # Pure-JAX reference check (same math outside Pallas).
    hidden = jnp.maximum(adj @ (X @ W0), 0.0)
    mean = adj @ (hidden @ Wmu)
    logstd = adj @ (hidden @ Wsig)
    Z = noise * jnp.exp(logstd) + mean
    ref = jax.nn.sigmoid(Z @ Z.T)
    np.testing.assert_allclose(np.asarray(A_pred), np.asarray(ref),
                               rtol=1e-5, atol=1e-5)

    print("KERNEL_OK")
</pallas_src>

<mosaic_0001>
module attributes {stable_mosaic.version = 11 : i64} {
  func.func @encoder_kernel(%arg0: memref<128x128xf32, #tpu.memory_space<vmem>>, %arg1: memref<128x128xf32, #tpu.memory_space<vmem>>, %arg2: memref<128x128xf32, #tpu.memory_space<vmem>>, %arg3: memref<128x256xf32, #tpu.memory_space<vmem>>, %arg4: memref<128x128xf32, #tpu.memory_space<vmem>>, %arg5: memref<128x128xf32, #tpu.memory_space<vmem>>) attributes {dimension_semantics = [], scalar_prefetch = 0 : i64, scratch_operands = 0 : i64, tpu.core_type = #tpu.core_type<tc>} {
    %c0 = arith.constant 0 : index
    %c0_0 = arith.constant 0 : index
    %0 = vector.load %arg1[%c0, %c0_0] : memref<128x128xf32, #tpu.memory_space<vmem>>, vector<128x128xf32>
    %c0_1 = arith.constant 0 : index
    %c0_2 = arith.constant 0 : index
    %1 = vector.load %arg0[%c0_1, %c0_2] : memref<128x128xf32, #tpu.memory_space<vmem>>, vector<128x128xf32>
    %c0_3 = arith.constant 0 : index
    %c0_4 = arith.constant 0 : index
    %2 = vector.load %arg2[%c0_3, %c0_4] : memref<128x128xf32, #tpu.memory_space<vmem>>, vector<128x128xf32>
    %cst = arith.constant dense<0.000000e+00> : vector<128x128xf32>
    %3 = tpu.matmul %1, %2, %cst {dimension_numbers = #tpu.dot_dimension_numbers<[1], [0], [0], [1], [0, 0, 1, 1], [], []>} : vector<128x128xf32>, vector<128x128xf32>, vector<128x128xf32> -> vector<128x128xf32>
    %cst_5 = arith.constant dense<0.000000e+00> : vector<128x128xf32>
    %4 = tpu.matmul %0, %3, %cst_5 {dimension_numbers = #tpu.dot_dimension_numbers<[1], [0], [0], [1], [0, 0, 1, 1], [], []>} : vector<128x128xf32>, vector<128x128xf32>, vector<128x128xf32> -> vector<128x128xf32>
    %cst_6 = arith.constant 0.000000e+00 : f32
    %5 = vector.broadcast %cst_6 : f32 to vector<128x128xf32>
    %6 = arith.maximumf %4, %5 : vector<128x128xf32>
    %c0_7 = arith.constant 0 : index
    %c0_8 = arith.constant 0 : index
    %7 = vector.load %arg3[%c0_7, %c0_8] : memref<128x256xf32, #tpu.memory_space<vmem>>, vector<128x256xf32>
    %cst_9 = arith.constant dense<0.000000e+00> : vector<128x256xf32>
    %8 = tpu.matmul %6, %7, %cst_9 {dimension_numbers = #tpu.dot_dimension_numbers<[1], [0], [0], [1], [0, 0, 1, 1], [], []>} : vector<128x128xf32>, vector<128x256xf32>, vector<128x256xf32> -> vector<128x256xf32>
    %cst_10 = arith.constant dense<0.000000e+00> : vector<128x256xf32>
    %9 = tpu.matmul %0, %8, %cst_10 {dimension_numbers = #tpu.dot_dimension_numbers<[1], [0], [0], [1], [0, 0, 1, 1], [], []>} : vector<128x128xf32>, vector<128x256xf32>, vector<128x256xf32> -> vector<128x256xf32>
    %10 = vector.extract_strided_slice %9 {offsets = [0, 0], sizes = [128, 128], strides = [1, 1]} : vector<128x256xf32> to vector<128x128xf32>
    %11 = vector.extract_strided_slice %9 {offsets = [0, 128], sizes = [128, 128], strides = [1, 1]} : vector<128x256xf32> to vector<128x128xf32>
    %c0_11 = arith.constant 0 : index
    %c0_12 = arith.constant 0 : index
    %12 = vector.load %arg4[%c0_11, %c0_12] : memref<128x128xf32, #tpu.memory_space<vmem>>, vector<128x128xf32>
    %13 = math.exp %11 : vector<128x128xf32>
    %14 = arith.mulf %12, %13 : vector<128x128xf32>
    %15 = arith.addf %14, %10 : vector<128x128xf32>
    %c0_13 = arith.constant 0 : index
    %c0_14 = arith.constant 0 : index
    %16 = vector.load %arg5[%c0_13, %c0_14] : memref<128x128xf32, #tpu.memory_space<vmem>>, vector<128x128xf32>
    tpu.vector_store %arg5[%c0_13, %c0_14], %15 {strides = array<i32>} : memref<128x128xf32, #tpu.memory_space<vmem>>, vector<128x128xf32>,
    return
  }
}

</mosaic_0001>

<llo_original>
// kernel: tpu_custom_call.1
$region0: #{tpu_custom_call.1}
  #allocation0 [shape = 'u32[]', space=smem, size = 0x4, offset = 0x4, fixed_abs, tag = 'smem constant byte address 0x4 - core index']
  #allocation1 [shape = 'u32[144,128]{1,0:T(1,128)}', space=vmem, size = 0x12000, scoped, tag = 'internal scratch']
  %s0 = inlined_call_operand.hbm [shape: f32[128,128], index: 0, kind: input, shape index: {}]
  %s1 = inlined_call_operand.hbm [shape: f32[128,128], index: 1, kind: input, shape index: {}]
  %s2 = inlined_call_operand.hbm [shape: f32[128,128], index: 2, kind: input, shape index: {}]
  %s3 = inlined_call_operand.hbm [shape: f32[128,256], index: 3, kind: input, shape index: {}]
  %s4 = inlined_call_operand.hbm [shape: f32[128,128], index: 4, kind: input, shape index: {}]
  %s5 = inlined_call_operand.hbm [shape: f32[128,128], index: 5, kind: output, shape index: {}]
  %s6 = sld [smem:[#allocation0]]
  $region50: #{tpu_custom_call.1} parent=0
    _
  %s8 = ssub.s32 1, %s6
  %s9 = scalar_select 0, %s8, %s6
  $region1: #{tpu_custom_call.1} parent=0
    #allocation2 [shape = 'u8[65536]{0}', space=vmem, size = 0x10000, scoped, tag = 'input window, operand 0, single buffered']
    #allocation3 [shape = 's32[1]{0}', space=sflag, size = 0x4, scoped, tag = 'scoped memory for tpu_custom_call.1']
    #allocation4 [shape = 's32[1]{0}', space=sflag, size = 0x4, scoped, tag = 'scoped memory for tpu_custom_call.1']
    #allocation5 [shape = 'u8[65536]{0}', space=vmem, size = 0x10000, scoped, tag = 'input window, operand 1, single buffered']
    #allocation6 [shape = 's32[1]{0}', space=sflag, size = 0x4, scoped, tag = 'scoped memory for tpu_custom_call.1']
    #allocation7 [shape = 'u8[65536]{0}', space=vmem, size = 0x10000, scoped, tag = 'input window, operand 2, single buffered']
    #allocation8 [shape = 'u8[131072]{0}', space=vmem, size = 0x20000, scoped, tag = 'input window, operand 3, single buffered']
    #allocation9 [shape = 's32[1]{0}', space=sflag, size = 0x4, scoped, tag = 'scoped memory for tpu_custom_call.1']
    #allocation10 [shape = 'u8[65536]{0}', space=vmem, size = 0x10000, scoped, tag = 'input window, operand 4, single buffered']
    #allocation11 [shape = 'u8[65536]{0}', space=vmem, size = 0x10000, scoped, tag = 'output window, operand 0, single buffered']
    %10 = vsyncpa [#allocation3], 0
    %11 = vsyncpa [#allocation6], 0
    %12 = vsyncpa [#allocation9], 0
    %13 = vsyncpa [#allocation4], 0
    // Predicated region
    $region2: #{tpu_custom_call.1} parent=1 // pred_check
      _
    $region3: #{tpu_custom_call.1} parent=1 // pred_check_branch
      %15 = sbr.rel (0) target = $region5
    $region4: #{tpu_custom_call.1} parent=1 // pred_region
      %s17 = ssub.s32 2048, 2048
      %18 = vsyncadd [#allocation3], %s17
      %s19 = sshll.u32 [#allocation2], 4
      %s20 = int_to_ptr.vmem [resolvable:$true] %s19
      %25 = dma.hbm_to_vmem [thread:$0]  %s0, 2048, %s20, [#allocation3], 128, 128, 8
    $region5: #{tpu_custom_call.1} parent=1 // pred_fallthru
      _
    // Predicated region
    $region6: #{tpu_custom_call.1} parent=1 // pred_check
      _
    $region7: #{tpu_custom_call.1} parent=1 // pred_check_branch
      %27 = sbr.rel (0) target = $region9
    $region8: #{tpu_custom_call.1} parent=1 // pred_region
      %s29 = ssub.s32 2048, 2048
      %30 = vsyncadd [#allocation6], %s29
      %s31 = sshll.u32 [#allocation5], 4
      %s32 = int_to_ptr.vmem [resolvable:$true] %s31
      %37 = dma.hbm_to_vmem [thread:$0]  %s1, 2048, %s32, [#allocation6], 128, 128, 8
    $region9: #{tpu_custom_call.1} parent=1 // pred_fallthru
      _
    // Predicated region
    $region10: #{tpu_custom_call.1} parent=1 // pred_check
      _
    $region11: #{tpu_custom_call.1} parent=1 // pred_check_branch
      %39 = sbr.rel (0) target = $region13
    $region12: #{tpu_custom_call.1} parent=1 // pred_region
      %s41 = ssub.s32 2048, 2048
      %42 = vsyncadd [#allocation6], %s41
      %s43 = sshll.u32 [#allocation7], 4
      %s44 = int_to_ptr.vmem [resolvable:$true] %s43
      %49 = dma.hbm_to_vmem [thread:$0]  %s2, 2048, %s44, [#allocation6], 128, 128, 8
    $region13: #{tpu_custom_call.1} parent=1 // pred_fallthru
      _
    // Predicated region
    $region14: #{tpu_custom_call.1} parent=1 // pred_check
      _
    $region15: #{tpu_custom_call.1} parent=1 // pred_check_branch
      %51 = sbr.rel (0) target = $region17
    $region16: #{tpu_custom_call.1} parent=1 // pred_region
      %s53 = ssub.s32 4096, 4096
      %54 = vsyncadd [#allocation9], %s53
      %s55 = sshll.u32 [#allocation8], 4
      %s56 = int_to_ptr.vmem [resolvable:$true] %s55
      %61 = dma.hbm_to_vmem [thread:$0]  %s3, 4096, %s56, [#allocation9], 256, 256, 16
    $region17: #{tpu_custom_call.1} parent=1 // pred_fallthru
      _
    // Predicated region
    $region18: #{tpu_custom_call.1} parent=1 // pred_check
      _
    $region19: #{tpu_custom_call.1} parent=1 // pred_check_branch
      %63 = sbr.rel (0) target = $region21
    $region20: #{tpu_custom_call.1} parent=1 // pred_region
      %s65 = ssub.s32 2048, 2048
      %66 = vsyncadd [#allocation9], %s65
      %s67 = sshll.u32 [#allocation10], 4
      %s68 = int_to_ptr.vmem [resolvable:$true] %s67
      %73 = dma.hbm_to_vmem [thread:$0]  %s4, 2048, %s68, [#allocation9], 128, 128, 8
    $region21: #{tpu_custom_call.1} parent=1 // pred_fallthru
      _
    // Predicated region
    $region22: #{tpu_custom_call.1} parent=1 // pred_check
      _
    $region23: #{tpu_custom_call.1} parent=1 // pred_check_branch
      %75 = sbr.rel (0) target = $region25
    $region24: #{tpu_custom_call.1} parent=1 // pred_region
      %76 = dma.done [#allocation3], 2048
    $region25: #{tpu_custom_call.1} parent=1 // pred_fallthru
      _
    // Predicated region
    $region26: #{tpu_custom_call.1} parent=1 // pred_check
      _
    $region27: #{tpu_custom_call.1} parent=1 // pred_check_branch
      %78 = sbr.rel (0) target = $region29
    $region28: #{tpu_custom_call.1} parent=1 // pred_region
      %79 = dma.done [#allocation6], 2048
    $region29: #{tpu_custom_call.1} parent=1 // pred_fallthru
      _
    // Predicated region
    $region30: #{tpu_custom_call.1} parent=1 // pred_check
      _
    $region31: #{tpu_custom_call.1} parent=1 // pred_check_branch
      %81 = sbr.rel (0) target = $region33
    $region32: #{tpu_custom_call.1} parent=1 // pred_region
      %82 = dma.done [#allocation6], 2048
    $region33: #{tpu_custom_call.1} parent=1 // pred_fallthru
      _
    // Predicated region
    $region34: #{tpu_custom_call.1} parent=1 // pred_check
      _
    $region35: #{tpu_custom_call.1} parent=1 // pred_check_branch
      %84 = sbr.rel (0) target = $region37
    $region36: #{tpu_custom_call.1} parent=1 // pred_region
      %85 = dma.done [#allocation9], 4096
    $region37: #{tpu_custom_call.1} parent=1 // pred_fallthru
      _
    // Predicated region
    $region38: #{tpu_custom_call.1} parent=1 // pred_check
      _
    $region39: #{tpu_custom_call.1} parent=1 // pred_check_branch
      %87 = sbr.rel (0) target = $region41
    $region40: #{tpu_custom_call.1} parent=1 // pred_region
      %88 = dma.done [#allocation9], 2048
    $region41: #{tpu_custom_call.1} parent=1 // pred_fallthru
      _
    %v89 = vld [vmem:[#allocation5] sm:$0xff]
    %v90 = vld [vmem:[#allocation5 + $0x8] sm:$0xff]
    %v91 = vld [vmem:[#allocation5 + $0x10] sm:$0xff]
    %v92 = vld [vmem:[#allocation5 + $0x18] sm:$0xff]
    %v93 = vld [vmem:[#allocation5 + $0x20] sm:$0xff]
    %v94 = vld [vmem:[#allocation5 + $0x28] sm:$0xff]
    %v95 = vld [vmem:[#allocation5 + $0x30] sm:$0xff]
    %v96 = vld [vmem:[#allocation5 + $0x38] sm:$0xff]
    %v97 = vld [vmem:[#allocation5 + $0x40] sm:$0xff]
    %v98 = vld [vmem:[#allocation5 + $0x48] sm:$0xff]
    %v99 = vld [vmem:[#allocation5 + $0x50] sm:$0xff]
    %v100 = vld [vmem:[#allocation5 + $0x58] sm:$0xff]
    %v101 = vld [vmem:[#allocation5 + $0x60] sm:$0xff]
    %v102 = vld [vmem:[#allocation5 + $0x68] sm:$0xff]
    %v103 = vld [vmem:[#allocation5 + $0x70] sm:$0xff]
    %v104 = vld [vmem:[#allocation5 + $0x78] sm:$0xff]
    %v105 = vld [vmem:[#allocation2] sm:$0xff]
    %v106 = vld [vmem:[#allocation2 + $0x8] sm:$0xff]
    %v107 = vld [vmem:[#allocation2 + $0x10] sm:$0xff]
    %v108 = vld [vmem:[#allocation2 + $0x18] sm:$0xff]
    %v109 = vld [vmem:[#allocation2 + $0x20] sm:$0xff]
    %v110 = vld [vmem:[#allocation2 + $0x28] sm:$0xff]
    %v111 = vld [vmem:[#allocation2 + $0x30] sm:$0xff]
    %v112 = vld [vmem:[#allocation2 + $0x38] sm:$0xff]
    %v113 = vld [vmem:[#allocation2 + $0x40] sm:$0xff]
    %v114 = vld [vmem:[#allocation2 + $0x48] sm:$0xff]
    %v115 = vld [vmem:[#allocation2 + $0x50] sm:$0xff]
    %v116 = vld [vmem:[#allocation2 + $0x58] sm:$0xff]
    %v117 = vld [vmem:[#allocation2 + $0x60] sm:$0xff]
    %v118 = vld [vmem:[#allocation2 + $0x68] sm:$0xff]
    %v119 = vld [vmem:[#allocation2 + $0x70] sm:$0xff]
    %v120 = vld [vmem:[#allocation2 + $0x78] sm:$0xff]
    %v121 = vld [vmem:[#allocation7] sm:$0xff]
    %v122 = vld [vmem:[#allocation7 + $0x8] sm:$0xff]
    %v123 = vld [vmem:[#allocation7 + $0x10] sm:$0xff]
    %v124 = vld [vmem:[#allocation7 + $0x18] sm:$0xff]
    %v125 = vld [vmem:[#allocation7 + $0x20] sm:$0xff]
    %v126 = vld [vmem:[#allocation7 + $0x28] sm:$0xff]
    %v127 = vld [vmem:[#allocation7 + $0x30] sm:$0xff]
    %v128 = vld [vmem:[#allocation7 + $0x38] sm:$0xff]
    %v129 = vld [vmem:[#allocation7 + $0x40] sm:$0xff]
    %v130 = vld [vmem:[#allocation7 + $0x48] sm:$0xff]
    %v131 = vld [vmem:[#allocation7 + $0x50] sm:$0xff]
    %v132 = vld [vmem:[#allocation7 + $0x58] sm:$0xff]
    %v133 = vld [vmem:[#allocation7 + $0x60] sm:$0xff]
    %v134 = vld [vmem:[#allocation7 + $0x68] sm:$0xff]
    %v135 = vld [vmem:[#allocation7 + $0x70] sm:$0xff]
    %v136 = vld [vmem:[#allocation7 + $0x78] sm:$0xff]
    %137 = vmatprep.subr.mxu0 0.0
    %138 = vmatpush1.msra.mxu0 %v121
    %139 = vmatprep.subr.mxu0 0.0
    %140 = vmatpush1.msra.mxu0 %v122
    %141 = vmatprep.subr.mxu0 0.0
    %142 = vmatpush1.msra.mxu0 %v123
    %143 = vmatprep.subr.mxu0 0.0
    %144 = vmatpush1.msra.mxu0 %v124
    %145 = vmatprep.subr.mxu0 0.0
    %146 = vmatpush1.msra.mxu0 %v125
    %147 = vmatprep.subr.mxu0 0.0
    %148 = vmatpush1.msra.mxu0 %v126
    %149 = vmatprep.subr.mxu0 0.0
    %150 = vmatpush1.msra.mxu0 %v127
    %151 = vmatprep.subr.mxu0 0.0
    %152 = vmatpush1.msra.mxu0 %v128
    %153 = vmatprep.subr.mxu0 0.0
    %154 = vmatpush1.msra.mxu0 %v129
    %155 = vmatprep.subr.mxu0 0.0
    %156 = vmatpush1.msra.mxu0 %v130
    %157 = vmatprep.subr.mxu0 0.0
    %158 = vmatpush1.msra.mxu0 %v131
    %159 = vmatprep.subr.mxu0 0.0
    %160 = vmatpush1.msra.mxu0 %v132
    %161 = vmatprep.subr.mxu0 0.0
    %162 = vmatpush1.msra.mxu0 %v133
    %163 = vmatprep.subr.mxu0 0.0
    %164 = vmatpush1.msra.mxu0 %v134
    %165 = vmatprep.subr.mxu0 0.0
    %166 = vmatpush1.msra.mxu0 %v135
    %167 = vmatprep.subr.mxu0 0.0
    %168 = vmatpush1.msra.mxu0 %v136
    %169 = vmatprep.subr.mxu0 0.0
    %170 = vmatpush1.msra.mxu0 0.0
    %171 = vmatprep.subr.mxu0 0.0
    %172 = vmatpush1.msra.mxu0 0.0
    %173 = vmatprep.subr.mxu0 0.0
    %174 = vmatpush1.msra.mxu0 0.0
    %175 = vmatprep.subr.mxu0 0.0
    %176 = vmatpush1.msra.mxu0 0.0
    %177 = vmatprep.subr.mxu0 0.0
    %178 = vmatpush1.msra.mxu0 0.0
    %179 = vmatprep.subr.mxu0 0.0
    %180 = vmatpush1.msra.mxu0 0.0
    %181 = vmatprep.subr.mxu0 0.0
    %182 = vmatpush1.msra.mxu0 0.0
    %183 = vmatprep.subr.mxu0 0.0
    %184 = vmatpush1.msra.mxu0 0.0
    %185 = vmatprep.subr.mxu0 0.0
    %186 = vmatpush1.msra.mxu0 0.0
    %187 = vmatprep.subr.mxu0 0.0
    %188 = vmatpush1.msra.mxu0 0.0
    %189 = vmatprep.subr.mxu0 0.0
    %190 = vmatpush1.msra.mxu0 0.0
    %191 = vmatprep.subr.mxu0 0.0
    %192 = vmatpush1.msra.mxu0 0.0
    %193 = vmatprep.subr.mxu0 0.0
    %194 = vmatpush1.msra.mxu0 0.0
    %195 = vmatprep.subr.mxu0 0.0
    %196 = vmatpush1.msra.mxu0 0.0
    %197 = vmatprep.subr.mxu0 0.0
    %198 = vmatpush1.msra.mxu0 0.0
    %199 = vmatprep.subr.mxu0 0.0
    %200 = vmatpush1.msra.mxu0 0.0
    %201 = vmatprep.mubr.f32.mxu0 0.0
    %202 = vmatmul.mubr.f32.gmra.mrb[0].mxu0 %v105
    %v203 = vpop.f32.mrb[0].mxu0
    %v204 = vadd.f32 0.0, %v203
    %v205 = vpop.f32.mrb[0].mxu0
    %206 = vmatprep.mubr.f32.mxu0 0.0
    %207 = vmatmul.mubr.f32.gmra.mrb[0].mxu0 %v106
    %v208 = vpop.f32.mrb[0].mxu0
    %v209 = vadd.f32 0.0, %v208
    %v210 = vpop.f32.mrb[0].mxu0
    %211 = vmatprep.mubr.f32.mxu0 0.0
    %212 = vmatmul.mubr.f32.gmra.mrb[0].mxu0 %v107
    %v213 = vpop.f32.mrb[0].mxu0
    %v214 = vadd.f32 0.0, %v213
    %v215 = vpop.f32.mrb[0].mxu0
    %216 = vmatprep.mubr.f32.mxu0 0.0
    %217 = vmatmul.mubr.f32.gmra.mrb[0].mxu0 %v108
    %v218 = vpop.f32.mrb[0].mxu0
    %v219 = vadd.f32 0.0, %v218
    %v220 = vpop.f32.mrb[0].mxu0
    %221 = vmatprep.mubr.f32.mxu0 0.0
    %222 = vmatmul.mubr.f32.gmra.mrb[0].mxu0 %v109
    %v223 = vpop.f32.mrb[0].mxu0
    %v224 = vadd.f32 0.0, %v223
    %v225 = vpop.f32.mrb[0].mxu0
    %226 = vmatprep.mubr.f32.mxu0 0.0
    %227 = vmatmul.mubr.f32.gmra.mrb[0].mxu0 %v110
    %v228 = vpop.f32.mrb[0].mxu0
    %v229 = vadd.f32 0.0, %v228
    %v230 = vpop.f32.mrb[0].mxu0
    %231 = vmatprep.mubr.f32.mxu0 0.0
    %232 = vmatmul.mubr.f32.gmra.mrb[0].mxu0 %v111
    %v233 = vpop.f32.mrb[0].mxu0
    %v234 = vadd.f32 0.0, %v233
    %v235 = vpop.f32.mrb[0].mxu0
    %236 = vmatprep.mubr.f32.mxu0 0.0
    %237 = vmatmul.mubr.f32.gmra.mrb[0].mxu0 %v112
    %v238 = vpop.f32.mrb[0].mxu0
    %v239 = vadd.f32 0.0, %v238
    %v240 = vpop.f32.mrb[0].mxu0
    %241 = vmatprep.mubr.f32.mxu0 0.0
    %242 = vmatmul.mubr.f32.gmra.mrb[0].mxu0 %v113
    %v243 = vpop.f32.mrb[0].mxu0
    %v244 = vadd.f32 0.0, %v243
    %v245 = vpop.f32.mrb[0].mxu0
    %246 = vmatprep.mubr.f32.mxu0 0.0
    %247 = vmatmul.mubr.f32.gmra.mrb[0].mxu0 %v114
    %v248 = vpop.f32.mrb[0].mxu0
    %v249 = vadd.f32 0.0, %v248
    %v250 = vpop.f32.mrb[0].mxu0
    %251 = vmatprep.mubr.f32.mxu0 0.0
    %252 = vmatmul.mubr.f32.gmra.mrb[0].mxu0 %v115
    %v253 = vpop.f32.mrb[0].mxu0
    %v254 = vadd.f32 0.0, %v253
    %v255 = vpop.f32.mrb[0].mxu0
    %256 = vmatprep.mubr.f32.mxu0 0.0
    %257 = vmatmul.mubr.f32.gmra.mrb[0].mxu0 %v116
    %v258 = vpop.f32.mrb[0].mxu0
    %v259 = vadd.f32 0.0, %v258
    %v260 = vpop.f32.mrb[0].mxu0
    %261 = vmatprep.mubr.f32.mxu0 0.0
    %262 = vmatmul.mubr.f32.gmra.mrb[0].mxu0 %v117
    %v263 = vpop.f32.mrb[0].mxu0
    %v264 = vadd.f32 0.0, %v263
    %v265 = vpop.f32.mrb[0].mxu0
    %266 = vmatprep.mubr.f32.mxu0 0.0
    %267 = vmatmul.mubr.f32.gmra.mrb[0].mxu0 %v118
    %v268 = vpop.f32.mrb[0].mxu0
    %v269 = vadd.f32 0.0, %v268
    %v270 = vpop.f32.mrb[0].mxu0
    %271 = vmatprep.mubr.f32.mxu0 0.0
    %272 = vmatmul.mubr.f32.gmra.mrb[0].mxu0 %v119
    %v273 = vpop.f32.mrb[0].mxu0
    %v274 = vadd.f32 0.0, %v273
    %v275 = vpop.f32.mrb[0].mxu0
    %276 = vmatprep.mubr.f32.mxu0 0.0
    %277 = vmatmul.mubr.f32.gmra.mrb[0].mxu0 %v120
    %v278 = vpop.f32.mrb[0].mxu0
    %v279 = vadd.f32 0.0, %v278
    %v280 = vpop.f32.mrb[0].mxu0
    %281 = vdwg.mxu0
    %282 = vmatprep.subr.mxu0 0.0
    %283 = vmatpush1.msra.mxu0 %v204
    %284 = vmatprep.subr.mxu0 0.0
    %285 = vmatpush1.msra.mxu0 %v209
    %286 = vmatprep.subr.mxu0 0.0
    %287 = vmatpush1.msra.mxu0 %v214
    %288 = vmatprep.subr.mxu0 0.0
    %289 = vmatpush1.msra.mxu0 %v219
    %290 = vmatprep.subr.mxu0 0.0
    %291 = vmatpush1.msra.mxu0 %v224
    %292 = vmatprep.subr.mxu0 0.0
    %293 = vmatpush1.msra.mxu0 %v229
    %294 = vmatprep.subr.mxu0 0.0
    %295 = vmatpush1.msra.mxu0 %v234
    %296 = vmatprep.subr.mxu0 0.0
    %297 = vmatpush1.msra.mxu0 %v239
    %298 = vmatprep.subr.mxu0 0.0
    %299 = vmatpush1.msra.mxu0 %v244
    %300 = vmatprep.subr.mxu0 0.0
    %301 = vmatpush1.msra.mxu0 %v249
    %302 = vmatprep.subr.mxu0 0.0
    %303 = vmatpush1.msra.mxu0 %v254
    %304 = vmatprep.subr.mxu0 0.0
    %305 = vmatpush1.msra.mxu0 %v259
    %306 = vmatprep.subr.mxu0 0.0
    %307 = vmatpush1.msra.mxu0 %v264
    %308 = vmatprep.subr.mxu0 0.0
    %309 = vmatpush1.msra.mxu0 %v269
    %310 = vmatprep.subr.mxu0 0.0
    %311 = vmatpush1.msra.mxu0 %v274
    %312 = vmatprep.subr.mxu0 0.0
    %313 = vmatpush1.msra.mxu0 %v279
    %314 = vmatprep.subr.mxu0 0.0
    %315 = vmatpush1.msra.mxu0 0.0
    %316 = vmatprep.subr.mxu0 0.0
    %317 = vmatpush1.msra.mxu0 0.0
    %318 = vmatprep.subr.mxu0 0.0
    %319 = vmatpush1.msra.mxu0 0.0
    %320 = vmatprep.subr.mxu0 0.0
    %321 = vmatpush1.msra.mxu0 0.0
    %322 = vmatprep.subr.mxu0 0.0
    %323 = vmatpush1.msra.mxu0 0.0
    %324 = vmatprep.subr.mxu0 0.0
    %325 = vmatpush1.msra.mxu0 0.0
    %326 = vmatprep.subr.mxu0 0.0
    %327 = vmatpush1.msra.mxu0 0.0
    %328 = vmatprep.subr.mxu0 0.0
    %329 = vmatpush1.msra.mxu0 0.0
    %330 = vmatprep.subr.mxu0 0.0
    %331 = vmatpush1.msra.mxu0 0.0
    %332 = vmatprep.subr.mxu0 0.0
    %333 = vmatpush1.msra.mxu0 0.0
    %334 = vmatprep.subr.mxu0 0.0
    %335 = vmatpush1.msra.mxu0 0.0
    %336 = vmatprep.subr.mxu0 0.0
    %337 = vmatpush1.msra.mxu0 0.0
    %338 = vmatprep.subr.mxu0 0.0
    %339 = vmatpush1.msra.mxu0 0.0
    %340 = vmatprep.subr.mxu0 0.0
    %341 = vmatpush1.msra.mxu0 0.0
    %342 = vmatprep.subr.mxu0 0.0
    %343 = vmatpush1.msra.mxu0 0.0
    %344 = vmatprep.subr.mxu0 0.0
    %345 = vmatpush1.msra.mxu0 0.0
    %346 = vmatprep.mubr.f32.mxu0 0.0
    %347 = vmatmul.mubr.f32.gmra.mrb[0].mxu0 %v89
    %v348 = vpop.f32.mrb[0].mxu0
    %v349 = vadd.f32 0.0, %v348
    %v350 = vpop.f32.mrb[0].mxu0
    %351 = vmatprep.mubr.f32.mxu0 0.0
    %352 = vmatmul.mubr.f32.gmra.mrb[0].mxu0 %v90
    %v353 = vpop.f32.mrb[0].mxu0
    %v354 = vadd.f32 0.0, %v353
    %v355 = vpop.f32.mrb[0].mxu0
    %356 = vmatprep.mubr.f32.mxu0 0.0
    %357 = vmatmul.mubr.f32.gmra.mrb[0].mxu0 %v91
    %v358 = vpop.f32.mrb[0].mxu0
    %v359 = vadd.f32 0.0, %v358
    %v360 = vpop.f32.mrb[0].mxu0
    %361 = vmatprep.mubr.f32.mxu0 0.0
    %362 = vmatmul.mubr.f32.gmra.mrb[0].mxu0 %v92
    %v363 = vpop.f32.mrb[0].mxu0
    %v364 = vadd.f32 0.0, %v363
    %v365 = vpop.f32.mrb[0].mxu0
    %366 = vmatprep.mubr.f32.mxu0 0.0
    %367 = vmatmul.mubr.f32.gmra.mrb[0].mxu0 %v93
    %v368 = vpop.f32.mrb[0].mxu0
    %v369 = vadd.f32 0.0, %v368
    %v370 = vpop.f32.mrb[0].mxu0
    %371 = vmatprep.mubr.f32.mxu0 0.0
    %372 = vmatmul.mubr.f32.gmra.mrb[0].mxu0 %v94
    %v373 = vpop.f32.mrb[0].mxu0
    %v374 = vadd.f32 0.0, %v373
    %v375 = vpop.f32.mrb[0].mxu0
    %376 = vmatprep.mubr.f32.mxu0 0.0
    %377 = vmatmul.mubr.f32.gmra.mrb[0].mxu0 %v95
    %v378 = vpop.f32.mrb[0].mxu0
    %v379 = vadd.f32 0.0, %v378
    %v380 = vpop.f32.mrb[0].mxu0
    %381 = vmatprep.mubr.f32.mxu0 0.0
    %382 = vmatmul.mubr.f32.gmra.mrb[0].mxu0 %v96
    %v383 = vpop.f32.mrb[0].mxu0
    %v384 = vadd.f32 0.0, %v383
    %v385 = vpop.f32.mrb[0].mxu0
    %386 = vmatprep.mubr.f32.mxu0 0.0
    %387 = vmatmul.mubr.f32.gmra.mrb[0].mxu0 %v97
    %v388 = vpop.f32.mrb[0].mxu0
    %v389 = vadd.f32 0.0, %v388
    %v390 = vpop.f32.mrb[0].mxu0
    %391 = vmatprep.mubr.f32.mxu0 0.0
    %392 = vmatmul.mubr.f32.gmra.mrb[0].mxu0 %v98
    %v393 = vpop.f32.mrb[0].mxu0
    %v394 = vadd.f32 0.0, %v393
    %v395 = vpop.f32.mrb[0].mxu0
    %396 = vmatprep.mubr.f32.mxu0 0.0
    %397 = vmatmul.mubr.f32.gmra.mrb[0].mxu0 %v99
    %v398 = vpop.f32.mrb[0].mxu0
    %v399 = vadd.f32 0.0, %v398
    %v400 = vpop.f32.mrb[0].mxu0
    %401 = vmatprep.mubr.f32.mxu0 0.0
    %402 = vmatmul.mubr.f32.gmra.mrb[0].mxu0 %v100
    %v403 = vpop.f32.mrb[0].mxu0
    %v404 = vadd.f32 0.0, %v403
    %v405 = vpop.f32.mrb[0].mxu0
    %406 = vmatprep.mubr.f32.mxu0 0.0
    %407 = vmatmul.mubr.f32.gmra.mrb[0].mxu0 %v101
    %v408 = vpop.f32.mrb[0].mxu0
    %v409 = vadd.f32 0.0, %v408
    %v410 = vpop.f32.mrb[0].mxu0
    %411 = vmatprep.mubr.f32.mxu0 0.0
    %412 = vmatmul.mubr.f32.gmra.mrb[0].mxu0 %v102
    %v413 = vpop.f32.mrb[0].mxu0
    %v414 = vadd.f32 0.0, %v413
    %v415 = vpop.f32.mrb[0].mxu0
    %416 = vmatprep.mubr.f32.mxu0 0.0
    %417 = vmatmul.mubr.f32.gmra.mrb[0].mxu0 %v103
    %v418 = vpop.f32.mrb[0].mxu0
    %v419 = vadd.f32 0.0, %v418
    %v420 = vpop.f32.mrb[0].mxu0
    %421 = vmatprep.mubr.f32.mxu0 0.0
    %422 = vmatmul.mubr.f32.gmra.mrb[0].mxu0 %v104
    %v423 = vpop.f32.mrb[0].mxu0
    %v424 = vadd.f32 0.0, %v423
    %v425 = vpop.f32.mrb[0].mxu0
    %426 = vdwg.mxu0
    %v427 = vmax.f32 %v349, 0.0
    %v428 = vmax.f32 %v354, 0.0
    %v429 = vmax.f32 %v359, 0.0
    %v430 = vmax.f32 %v364, 0.0
    %v431 = vmax.f32 %v369, 0.0
    %v432 = vmax.f32 %v374, 0.0
    %v433 = vmax.f32 %v379, 0.0
    %v434 = vmax.f32 %v384, 0.0
    %v435 = vmax.f32 %v389, 0.0
    %v436 = vmax.f32 %v394, 0.0
    %v437 = vmax.f32 %v399, 0.0
    %v438 = vmax.f32 %v404, 0.0
    %v439 = vmax.f32 %v409, 0.0
    %v440 = vmax.f32 %v414, 0.0
    %v441 = vmax.f32 %v419, 0.0
    %v442 = vmax.f32 %v424, 0.0
    %v443 = vld [vmem:[#allocation8] sm:$0xff]
    %v444 = vld [vmem:[#allocation8 + $0x8] sm:$0xff]
    %v445 = vld [vmem:[#allocation8 + $0x10] sm:$0xff]
    %v446 = vld [vmem:[#allocation8 + $0x18] sm:$0xff]
    %v447 = vld [vmem:[#allocation8 + $0x20] sm:$0xff]
    %v448 = vld [vmem:[#allocation8 + $0x28] sm:$0xff]
    %v449 = vld [vmem:[#allocation8 + $0x30] sm:$0xff]
    %v450 = vld [vmem:[#allocation8 + $0x38] sm:$0xff]
    %v451 = vld [vmem:[#allocation8 + $0x40] sm:$0xff]
    %v452 = vld [vmem:[#allocation8 + $0x48] sm:$0xff]
    %v453 = vld [vmem:[#allocation8 + $0x50] sm:$0xff]
    %v454 = vld [vmem:[#allocation8 + $0x58] sm:$0xff]
    %v455 = vld [vmem:[#allocation8 + $0x60] sm:$0xff]
    %v456 = vld [vmem:[#allocation8 + $0x68] sm:$0xff]
    %v457 = vld [vmem:[#allocation8 + $0x70] sm:$0xff]
    %v458 = vld [vmem:[#allocation8 + $0x78] sm:$0xff]
    %v459 = vld [vmem:[#allocation8 + $0x80] sm:$0xff]
    %v460 = vld [vmem:[#allocation8 + $0x88] sm:$0xff]
    %v461 = vld [vmem:[#allocation8 + $0x90] sm:$0xff]
    %v462 = vld [vmem:[#allocation8 + $0x98] sm:$0xff]
    %v463 = vld [vmem:[#allocation8 + $0xa0] sm:$0xff]
    %v464 = vld [vmem:[#allocation8 + $0xa8] sm:$0xff]
    %v465 = vld [vmem:[#allocation8 + $0xb0] sm:$0xff]
    %v466 = vld [vmem:[#allocation8 + $0xb8] sm:$0xff]
    %v467 = vld [vmem:[#allocation8 + $0xc0] sm:$0xff]
    %v468 = vld [vmem:[#allocation8 + $0xc8] sm:$0xff]
    %v469 = vld [vmem:[#allocation8 + $0xd0] sm:$0xff]
    %v470 = vld [vmem:[#allocation8 + $0xd8] sm:$0xff]
    %v471 = vld [vmem:[#allocation8 + $0xe0] sm:$0xff]
    %v472 = vld [vmem:[#allocation8 + $0xe8] sm:$0xff]
    %v473 = vld [vmem:[#allocation8 + $0xf0] sm:$0xff]
    %v474 = vld [vmem:[#allocation8 + $0xf8] sm:$0xff]
    %475 = vmatprep.subr.mxu0 %v444
    %476 = vmatpush1.msra.mxu0 %v443
    %477 = vmatprep.subr.mxu0 %v446
    %478 = vmatpush1.msra.mxu0 %v445
    %479 = vmatprep.subr.mxu0 %v448
    %480 = vmatpush1.msra.mxu0 %v447
    %481 = vmatprep.subr.mxu0 %v450
    %482 = vmatpush1.msra.mxu0 %v449
    %483 = vmatprep.subr.mxu0 %v452
    %484 = vmatpush1.msra.mxu0 %v451
    %485 = vmatprep.subr.mxu0 %v454
    %486 = vmatpush1.msra.mxu0 %v453
    %487 = vmatprep.subr.mxu0 %v456
    %488 = vmatpush1.msra.mxu0 %v455
    %489 = vmatprep.subr.mxu0 %v458
    %490 = vmatpush1.msra.mxu0 %v457
    %491 = vmatprep.subr.mxu0 %v460
    %492 = vmatpush1.msra.mxu0 %v459
    %493 = vmatprep.subr.mxu0 %v462
    %494 = vmatpush1.msra.mxu0 %v461
    %495 = vmatprep.subr.mxu0 %v464
    %496 = vmatpush1.msra.mxu0 %v463
    %497 = vmatprep.subr.mxu0 %v466
    %498 = vmatpush1.msra.mxu0 %v465
    %499 = vmatprep.subr.mxu0 %v468
    %500 = vmatpush1.msra.mxu0 %v467
    %501 = vmatprep.subr.mxu0 %v470
    %502 = vmatpush1.msra.mxu0 %v469
    %503 = vmatprep.subr.mxu0 %v472
    %504 = vmatpush1.msra.mxu0 %v471
    %505 = vmatprep.subr.mxu0 %v474
    %506 = vmatpush1.msra.mxu0 %v473
    %507 = vmatprep.subr.mxu0 0.0
    %508 = vmatpush1.msra.mxu0 0.0
    %509 = vmatprep.subr.mxu0 0.0
    %510 = vmatpush1.msra.mxu0 0.0
    %511 = vmatprep.subr.mxu0 0.0
    %512 = vmatpush1.msra.mxu0 0.0
    %513 = vmatprep.subr.mxu0 0.0
    %514 = vmatpush1.msra.mxu0 0.0
    %515 = vmatprep.subr.mxu0 0.0
    %516 = vmatpush1.msra.mxu0 0.0
    %517 = vmatprep.subr.mxu0 0.0
    %518 = vmatpush1.msra.mxu0 0.0
    %519 = vmatprep.subr.mxu0 0.0
    %520 = vmatpush1.msra.mxu0 0.0
    %521 = vmatprep.subr.mxu0 0.0
    %522 = vmatpush1.msra.mxu0 0.0
    %523 = vmatprep.subr.mxu0 0.0
    %524 = vmatpush1.msra.mxu0 0.0
    %525 = vmatprep.subr.mxu0 0.0
    %526 = vmatpush1.msra.mxu0 0.0
    %527 = vmatprep.subr.mxu0 0.0
    %528 = vmatpush1.msra.mxu0 0.0
    %529 = vmatprep.subr.mxu0 0.0
    %530 = vmatpush1.msra.mxu0 0.0
    %531 = vmatprep.subr.mxu0 0.0
    %532 = vmatpush1.msra.mxu0 0.0
    %533 = vmatprep.subr.mxu0 0.0
    %534 = vmatpush1.msra.mxu0 0.0
    %535 = vmatprep.subr.mxu0 0.0
    %536 = vmatpush1.msra.mxu0 0.0
    %537 = vmatprep.subr.mxu0 0.0
    %538 = vmatpush1.msra.mxu0 0.0
    %539 = vmatprep.mubr.f32.mxu0 0.0
    %540 = vmatmul.mubr.f32.gmra.mrb[0].mxu0 %v427
    %v541 = vpop.f32.mrb[0].mxu0
    %v542 = vadd.f32 0.0, %v541
    %v543 = vpop.f32.mrb[0].mxu0
    %v544 = vadd.f32 0.0, %v543
    %545 = vmatprep.mubr.f32.mxu0 0.0
    %546 = vmatmul.mubr.f32.gmra.mrb[0].mxu0 %v428
    %v547 = vpop.f32.mrb[0].mxu0
    %v548 = vadd.f32 0.0, %v547
    %v549 = vpop.f32.mrb[0].mxu0
    %v550 = vadd.f32 0.0, %v549
    %551 = vmatprep.mubr.f32.mxu0 0.0
    %552 = vmatmul.mubr.f32.gmra.mrb[0].mxu0 %v429
    %v553 = vpop.f32.mrb[0].mxu0
    %v554 = vadd.f32 0.0, %v553
    %v555 = vpop.f32.mrb[0].mxu0
    %v556 = vadd.f32 0.0, %v555
    %557 = vmatprep.mubr.f32.mxu0 0.0
    %558 = vmatmul.mubr.f32.gmra.mrb[0].mxu0 %v430
    %v559 = vpop.f32.mrb[0].mxu0
    %v560 = vadd.f32 0.0, %v559
    %v561 = vpop.f32.mrb[0].mxu0
    %v562 = vadd.f32 0.0, %v561
    %563 = vmatprep.mubr.f32.mxu0 0.0
    %564 = vmatmul.mubr.f32.gmra.mrb[0].mxu0 %v431
    %v565 = vpop.f32.mrb[0].mxu0
    %v566 = vadd.f32 0.0, %v565
    %v567 = vpop.f32.mrb[0].mxu0
    %v568 = vadd.f32 0.0, %v567
    %569 = vmatprep.mubr.f32.mxu0 0.0
    %570 = vmatmul.mubr.f32.gmra.mrb[0].mxu0 %v432
    %v571 = vpop.f32.mrb[0].mxu0
    %v572 = vadd.f32 0.0, %v571
    %v573 = vpop.f32.mrb[0].mxu0
    %v574 = vadd.f32 0.0, %v573
    %575 = vmatprep.mubr.f32.mxu0 0.0
    %576 = vmatmul.mubr.f32.gmra.mrb[0].mxu0 %v433
    %v577 = vpop.f32.mrb[0].mxu0
    %v578 = vadd.f32 0.0, %v577
    %v579 = vpop.f32.mrb[0].mxu0
    %v580 = vadd.f32 0.0, %v579
    %581 = vmatprep.mubr.f32.mxu0 0.0
    %582 = vmatmul.mubr.f32.gmra.mrb[0].mxu0 %v434
    %v583 = vpop.f32.mrb[0].mxu0
    %v584 = vadd.f32 0.0, %v583
    %v585 = vpop.f32.mrb[0].mxu0
    %v586 = vadd.f32 0.0, %v585
    %587 = vmatprep.mubr.f32.mxu0 0.0
    %588 = vmatmul.mubr.f32.gmra.mrb[0].mxu0 %v435
    %v589 = vpop.f32.mrb[0].mxu0
    %v590 = vadd.f32 0.0, %v589
    %v591 = vpop.f32.mrb[0].mxu0
    %v592 = vadd.f32 0.0, %v591
    %593 = vmatprep.mubr.f32.mxu0 0.0
    %594 = vmatmul.mubr.f32.gmra.mrb[0].mxu0 %v436
    %v595 = vpop.f32.mrb[0].mxu0
    %v596 = vadd.f32 0.0, %v595
    %v597 = vpop.f32.mrb[0].mxu0
    %v598 = vadd.f32 0.0, %v597
    %599 = vmatprep.mubr.f32.mxu0 0.0
    %600 = vmatmul.mubr.f32.gmra.mrb[0].mxu0 %v437
    %v601 = vpop.f32.mrb[0].mxu0
    %v602 = vadd.f32 0.0, %v601
    %v603 = vpop.f32.mrb[0].mxu0
    %v604 = vadd.f32 0.0, %v603
    %605 = vmatprep.mubr.f32.mxu0 0.0
    %606 = vmatmul.mubr.f32.gmra.mrb[0].mxu0 %v438
    %v607 = vpop.f32.mrb[0].mxu0
    %v608 = vadd.f32 0.0, %v607
    %v609 = vpop.f32.mrb[0].mxu0
    %v610 = vadd.f32 0.0, %v609
    %611 = vmatprep.mubr.f32.mxu0 0.0
    %612 = vmatmul.mubr.f32.gmra.mrb[0].mxu0 %v439
    %v613 = vpop.f32.mrb[0].mxu0
    %v614 = vadd.f32 0.0, %v613
    %v615 = vpop.f32.mrb[0].mxu0
    %v616 = vadd.f32 0.0, %v615
    %617 = vmatprep.mubr.f32.mxu0 0.0
    %618 = vmatmul.mubr.f32.gmra.mrb[0].mxu0 %v440
    %v619 = vpop.f32.mrb[0].mxu0
    %v620 = vadd.f32 0.0, %v619
    %v621 = vpop.f32.mrb[0].mxu0
    %v622 = vadd.f32 0.0, %v621
    %623 = vmatprep.mubr.f32.mxu0 0.0
    %624 = vmatmul.mubr.f32.gmra.mrb[0].mxu0 %v441
    %v625 = vpop.f32.mrb[0].mxu0
    %v626 = vadd.f32 0.0, %v625
    %v627 = vpop.f32.mrb[0].mxu0
    %v628 = vadd.f32 0.0, %v627
    %629 = vmatprep.mubr.f32.mxu0 0.0
    %630 = vmatmul.mubr.f32.gmra.mrb[0].mxu0 %v442
    %v631 = vpop.f32.mrb[0].mxu0
    %v632 = vadd.f32 0.0, %v631
    %v633 = vpop.f32.mrb[0].mxu0
    %v634 = vadd.f32 0.0, %v633
    %635 = vdwg.mxu0
    %636 = vmatprep.subr.mxu0 %v544
    %637 = vmatpush1.msra.mxu0 %v542
    %638 = vmatprep.subr.mxu0 %v550
    %639 = vmatpush1.msra.mxu0 %v548
    %640 = vmatprep.subr.mxu0 %v556
    %641 = vmatpush1.msra.mxu0 %v554
    %642 = vmatprep.subr.mxu0 %v562
    %643 = vmatpush1.msra.mxu0 %v560
    %644 = vmatprep.subr.mxu0 %v568
    %645 = vmatpush1.msra.mxu0 %v566
    %646 = vmatprep.subr.mxu0 %v574
    %647 = vmatpush1.msra.mxu0 %v572
    %648 = vmatprep.subr.mxu0 %v580
    %649 = vmatpush1.msra.mxu0 %v578
    %650 = vmatprep.subr.mxu0 %v586
    %651 = vmatpush1.msra.mxu0 %v584
    %652 = vmatprep.subr.mxu0 %v592
    %653 = vmatpush1.msra.mxu0 %v590
    %654 = vmatprep.subr.mxu0 %v598
    %655 = vmatpush1.msra.mxu0 %v596
    %656 = vmatprep.subr.mxu0 %v604
    %657 = vmatpush1.msra.mxu0 %v602
    %658 = vmatprep.subr.mxu0 %v610
    %659 = vmatpush1.msra.mxu0 %v608
    %660 = vmatprep.subr.mxu0 %v616
    %661 = vmatpush1.msra.mxu0 %v614
    %662 = vmatprep.subr.mxu0 %v622
    %663 = vmatpush1.msra.mxu0 %v620
    %664 = vmatprep.subr.mxu0 %v628
    %665 = vmatpush1.msra.mxu0 %v626
    %666 = vmatprep.subr.mxu0 %v634
    %667 = vmatpush1.msra.mxu0 %v632
    %668 = vmatprep.subr.mxu0 0.0
    %669 = vmatpush1.msra.mxu0 0.0
    %670 = vmatprep.subr.mxu0 0.0
    %671 = vmatpush1.msra.mxu0 0.0
    %672 = vmatprep.subr.mxu0 0.0
    %673 = vmatpush1.msra.mxu0 0.0
    %674 = vmatprep.subr.mxu0 0.0
    %675 = vmatpush1.msra.mxu0 0.0
    %676 = vmatprep.subr.mxu0 0.0
    %677 = vmatpush1.msra.mxu0 0.0
    %678 = vmatprep.subr.mxu0 0.0
    %679 = vmatpush1.msra.mxu0 0.0
    %680 = vmatprep.subr.mxu0 0.0
    %681 = vmatpush1.msra.mxu0 0.0
    %682 = vmatprep.subr.mxu0 0.0
    %683 = vmatpush1.msra.mxu0 0.0
    %684 = vmatprep.subr.mxu0 0.0
    %685 = vmatpush1.msra.mxu0 0.0
    %686 = vmatprep.subr.mxu0 0.0
    %687 = vmatpush1.msra.mxu0 0.0
    %688 = vmatprep.subr.mxu0 0.0
    %689 = vmatpush1.msra.mxu0 0.0
    %690 = vmatprep.subr.mxu0 0.0
    %691 = vmatpush1.msra.mxu0 0.0
    %692 = vmatprep.subr.mxu0 0.0
    %693 = vmatpush1.msra.mxu0 0.0
    %694 = vmatprep.subr.mxu0 0.0
    %695 = vmatpush1.msra.mxu0 0.0
    %696 = vmatprep.subr.mxu0 0.0
    %697 = vmatpush1.msra.mxu0 0.0
    %698 = vmatprep.subr.mxu0 0.0
    %699 = vmatpush1.msra.mxu0 0.0
    %700 = vmatprep.mubr.f32.mxu0 0.0
    %701 = vmatmul.mubr.f32.gmra.mrb[0].mxu0 %v89
    %v702 = vpop.f32.mrb[0].mxu0
    %v703 = vadd.f32 0.0, %v702
    %v704 = vpop.f32.mrb[0].mxu0
    %v705 = vadd.f32 0.0, %v704
    %706 = vmatprep.mubr.f32.mxu0 0.0
    %707 = vmatmul.mubr.f32.gmra.mrb[0].mxu0 %v90
    %v708 = vpop.f32.mrb[0].mxu0
    %v709 = vadd.f32 0.0, %v708
    %v710 = vpop.f32.mrb[0].mxu0
    %v711 = vadd.f32 0.0, %v710
    %712 = vmatprep.mubr.f32.mxu0 0.0
    %713 = vmatmul.mubr.f32.gmra.mrb[0].mxu0 %v91
    %v714 = vpop.f32.mrb[0].mxu0
    %v715 = vadd.f32 0.0, %v714
    %v716 = vpop.f32.mrb[0].mxu0
    %v717 = vadd.f32 0.0, %v716
    %718 = vmatprep.mubr.f32.mxu0 0.0
    %719 = vmatmul.mubr.f32.gmra.mrb[0].mxu0 %v92
    %v720 = vpop.f32.mrb[0].mxu0
    %v721 = vadd.f32 0.0, %v720
    %v722 = vpop.f32.mrb[0].mxu0
    %v723 = vadd.f32 0.0, %v722
    %724 = vmatprep.mubr.f32.mxu0 0.0
    %725 = vmatmul.mubr.f32.gmra.mrb[0].mxu0 %v93
    %v726 = vpop.f32.mrb[0].mxu0
    %v727 = vadd.f32 0.0, %v726
    %v728 = vpop.f32.mrb[0].mxu0
    %v729 = vadd.f32 0.0, %v728
    %730 = vmatprep.mubr.f32.mxu0 0.0
    %731 = vmatmul.mubr.f32.gmra.mrb[0].mxu0 %v94
    %v732 = vpop.f32.mrb[0].mxu0
    %v733 = vadd.f32 0.0, %v732
    %v734 = vpop.f32.mrb[0].mxu0
    %v735 = vadd.f32 0.0, %v734
    %736 = vmatprep.mubr.f32.mxu0 0.0
    %737 = vmatmul.mubr.f32.gmra.mrb[0].mxu0 %v95
    %v738 = vpop.f32.mrb[0].mxu0
    %v739 = vadd.f32 0.0, %v738
    %v740 = vpop.f32.mrb[0].mxu0
    %v741 = vadd.f32 0.0, %v740
    %742 = vmatprep.mubr.f32.mxu0 0.0
    %743 = vmatmul.mubr.f32.gmra.mrb[0].mxu0 %v96
    %v744 = vpop.f32.mrb[0].mxu0
    %v745 = vadd.f32 0.0, %v744
    %v746 = vpop.f32.mrb[0].mxu0
    %v747 = vadd.f32 0.0, %v746
    %748 = vmatprep.mubr.f32.mxu0 0.0
    %749 = vmatmul.mubr.f32.gmra.mrb[0].mxu0 %v97
    %v750 = vpop.f32.mrb[0].mxu0
    %v751 = vadd.f32 0.0, %v750
    %v752 = vpop.f32.mrb[0].mxu0
    %v753 = vadd.f32 0.0, %v752
    %754 = vmatprep.mubr.f32.mxu0 0.0
    %755 = vmatmul.mubr.f32.gmra.mrb[0].mxu0 %v98
    %v756 = vpop.f32.mrb[0].mxu0
    %v757 = vadd.f32 0.0, %v756
    %v758 = vpop.f32.mrb[0].mxu0
    %v759 = vadd.f32 0.0, %v758
    %760 = vmatprep.mubr.f32.mxu0 0.0
    %761 = vmatmul.mubr.f32.gmra.mrb[0].mxu0 %v99
    %v762 = vpop.f32.mrb[0].mxu0
    %v763 = vadd.f32 0.0, %v762
    %v764 = vpop.f32.mrb[0].mxu0
    %v765 = vadd.f32 0.0, %v764
    %766 = vmatprep.mubr.f32.mxu0 0.0
    %767 = vmatmul.mubr.f32.gmra.mrb[0].mxu0 %v100
    %v768 = vpop.f32.mrb[0].mxu0
    %v769 = vadd.f32 0.0, %v768
    %v770 = vpop.f32.mrb[0].mxu0
    %v771 = vadd.f32 0.0, %v770
    %772 = vmatprep.mubr.f32.mxu0 0.0
    %773 = vmatmul.mubr.f32.gmra.mrb[0].mxu0 %v101
    %v774 = vpop.f32.mrb[0].mxu0
    %v775 = vadd.f32 0.0, %v774
    %v776 = vpop.f32.mrb[0].mxu0
    %v777 = vadd.f32 0.0, %v776
    %778 = vmatprep.mubr.f32.mxu0 0.0
    %779 = vmatmul.mubr.f32.gmra.mrb[0].mxu0 %v102
    %v780 = vpop.f32.mrb[0].mxu0
    %v781 = vadd.f32 0.0, %v780
    %v782 = vpop.f32.mrb[0].mxu0
    %v783 = vadd.f32 0.0, %v782
    %784 = vmatprep.mubr.f32.mxu0 0.0
    %785 = vmatmul.mubr.f32.gmra.mrb[0].mxu0 %v103
    %v786 = vpop.f32.mrb[0].mxu0
    %v787 = vadd.f32 0.0, %v786
    %v788 = vpop.f32.mrb[0].mxu0
    %v789 = vadd.f32 0.0, %v788
    %790 = vmatprep.mubr.f32.mxu0 0.0
    %791 = vmatmul.mubr.f32.gmra.mrb[0].mxu0 %v104
    %v792 = vpop.f32.mrb[0].mxu0
    %v793 = vadd.f32 0.0, %v792
    %v794 = vpop.f32.mrb[0].mxu0
    %v795 = vadd.f32 0.0, %v794
    %796 = vdwg.mxu0
    %v797 = vld [vmem:[#allocation10] sm:$0xff]
    %v798 = vld [vmem:[#allocation10 + $0x8] sm:$0xff]
    %v799 = vld [vmem:[#allocation10 + $0x10] sm:$0xff]
    %v800 = vld [vmem:[#allocation10 + $0x18] sm:$0xff]
    %v801 = vld [vmem:[#allocation10 + $0x20] sm:$0xff]
    %v802 = vld [vmem:[#allocation10 + $0x28] sm:$0xff]
    %v803 = vld [vmem:[#allocation10 + $0x30] sm:$0xff]
    %v804 = vld [vmem:[#allocation10 + $0x38] sm:$0xff]
    %v805 = vld [vmem:[#allocation10 + $0x40] sm:$0xff]
    %v806 = vld [vmem:[#allocation10 + $0x48] sm:$0xff]
    %v807 = vld [vmem:[#allocation10 + $0x50] sm:$0xff]
    %v808 = vld [vmem:[#allocation10 + $0x58] sm:$0xff]
    %v809 = vld [vmem:[#allocation10 + $0x60] sm:$0xff]
    %v810 = vld [vmem:[#allocation10 + $0x68] sm:$0xff]
    %v811 = vld [vmem:[#allocation10 + $0x70] sm:$0xff]
    %v812 = vld [vmem:[#allocation10 + $0x78] sm:$0xff]
    %v813 = vmul.f32 %v705, 1.442695
    %v814 = vpow.pop %v813
    %v815 = vmul.f32 %v711, 1.442695
    %v816 = vpow.pop %v815
    %v817 = vmul.f32 %v717, 1.442695
    %v818 = vpow.pop %v817
    %v819 = vmul.f32 %v723, 1.442695
    %v820 = vpow.pop %v819
    %v821 = vmul.f32 %v729, 1.442695
    %v822 = vpow.pop %v821
    %v823 = vmul.f32 %v735, 1.442695
    %v824 = vpow.pop %v823
    %v825 = vmul.f32 %v741, 1.442695
    %v826 = vpow.pop %v825
    %v827 = vmul.f32 %v747, 1.442695
    %v828 = vpow.pop %v827
    %v829 = vmul.f32 %v753, 1.442695
    %v830 = vpow.pop %v829
    %v831 = vmul.f32 %v759, 1.442695
    %v832 = vpow.pop %v831
    %v833 = vmul.f32 %v765, 1.442695
    %v834 = vpow.pop %v833
    %v835 = vmul.f32 %v771, 1.442695
    %v836 = vpow.pop %v835
    %v837 = vmul.f32 %v777, 1.442695
    %v838 = vpow.pop %v837
    %v839 = vmul.f32 %v783, 1.442695
    %v840 = vpow.pop %v839
    %v841 = vmul.f32 %v789, 1.442695
    %v842 = vpow.pop %v841
    %v843 = vmul.f32 %v795, 1.442695
    %v844 = vpow.pop %v843
    %v845 = vmul.f32 %v797, %v814
    %v846 = vmul.f32 %v798, %v816
    %v847 = vmul.f32 %v799, %v818
    %v848 = vmul.f32 %v800, %v820
    %v849 = vmul.f32 %v801, %v822
    %v850 = vmul.f32 %v802, %v824
    %v851 = vmul.f32 %v803, %v826
    %v852 = vmul.f32 %v804, %v828
    %v853 = vmul.f32 %v805, %v830
    %v854 = vmul.f32 %v806, %v832
    %v855 = vmul.f32 %v807, %v834
    %v856 = vmul.f32 %v808, %v836
    %v857 = vmul.f32 %v809, %v838
    %v858 = vmul.f32 %v810, %v840
    %v859 = vmul.f32 %v811, %v842
    %v860 = vmul.f32 %v812, %v844
    %v861 = vadd.f32 %v845, %v703
    %v862 = vadd.f32 %v846, %v709
    %v863 = vadd.f32 %v847, %v715
    %v864 = vadd.f32 %v848, %v721
    %v865 = vadd.f32 %v849, %v727
    %v866 = vadd.f32 %v850, %v733
    %v867 = vadd.f32 %v851, %v739
    %v868 = vadd.f32 %v852, %v745
    %v869 = vadd.f32 %v853, %v751
    %v870 = vadd.f32 %v854, %v757
    %v871 = vadd.f32 %v855, %v763
    %v872 = vadd.f32 %v856, %v769
    %v873 = vadd.f32 %v857, %v775
    %v874 = vadd.f32 %v858, %v781
    %v875 = vadd.f32 %v859, %v787
    %v876 = vadd.f32 %v860, %v793
    %877 = vst [vmem:[#allocation11] sm:$0xff] %v861
    %878 = vst [vmem:[#allocation11 + $0x8] sm:$0xff] %v862
    %879 = vst [vmem:[#allocation11 + $0x10] sm:$0xff] %v863
    %880 = vst [vmem:[#allocation11 + $0x18] sm:$0xff] %v864
    %881 = vst [vmem:[#allocation11 + $0x20] sm:$0xff] %v865
    %882 = vst [vmem:[#allocation11 + $0x28] sm:$0xff] %v866
    %883 = vst [vmem:[#allocation11 + $0x30] sm:$0xff] %v867
    %884 = vst [vmem:[#allocation11 + $0x38] sm:$0xff] %v868
    %885 = vst [vmem:[#allocation11 + $0x40] sm:$0xff] %v869
    %886 = vst [vmem:[#allocation11 + $0x48] sm:$0xff] %v870
    %887 = vst [vmem:[#allocation11 + $0x50] sm:$0xff] %v871
    %888 = vst [vmem:[#allocation11 + $0x58] sm:$0xff] %v872
    %889 = vst [vmem:[#allocation11 + $0x60] sm:$0xff] %v873
    %890 = vst [vmem:[#allocation11 + $0x68] sm:$0xff] %v874
    %891 = vst [vmem:[#allocation11 + $0x70] sm:$0xff] %v875
    %892 = vst [vmem:[#allocation11 + $0x78] sm:$0xff] %v876
    // Predicated region
    $region42: #{tpu_custom_call.1} parent=1 // pred_check
      _
    $region43: #{tpu_custom_call.1} parent=1 // pred_check_branch
      %894 = sbr.rel (0) target = $region45
    $region44: #{tpu_custom_call.1} parent=1 // pred_region
      %s896 = ssub.s32 2048, 2048
      %897 = vsyncadd [#allocation4], %s896
      %s898 = sshll.u32 [#allocation11], 4
      %s899 = int_to_ptr.vmem [resolvable:$true] %s898
      %904 = dma.vmem_to_hbm [thread:$0]  %s899, 2048, %s5, [#allocation4], 128, 128, 8
    $region45: #{tpu_custom_call.1} parent=1 // pred_fallthru
      _
    // Predicated region
    $region46: #{tpu_custom_call.1} parent=1 // pred_check
      _
    $region47: #{tpu_custom_call.1} parent=1 // pred_check_branch
      %906 = sbr.rel (0) target = $region49
    $region48: #{tpu_custom_call.1} parent=1 // pred_region
      %907 = dma.done [#allocation4], 2048
    $region49: #{tpu_custom_call.1} parent=1 // pred_fallthru
      _
    %908 = vsyncpa [#allocation3], 1
    %909 = vsyncpa [#allocation6], 1
    %910 = vsyncpa [#allocation9], 1
    %911 = vsyncpa [#allocation4], 1

</llo_original>
